<compile_context>
chip_gen: v5e
topology: v5e:2x2
jax: 0.10.0
libtpu: 0.0.40
codegen_flags: <defaults>
</compile_context>

<pallas_src>
from typing import Dict

import jax
import jax.numpy as jnp
from jax.experimental import pallas as pl
from jax.experimental.pallas import tpu as pltpu

UNK = "<UNK>"
PAD = "<PAD>"


def _round_up(x: int, m: int) -> int:
    return ((x + m - 1) // m) * m


# ----------------------------- Pallas kernels --------------------------------
def _layer1_kernel(x_ref, w1_ref, b1_ref, h_ref):
    # x: (B_pad, h_enc) bf16, w1: (h_enc, h_dec) bf16, b1: (1, h_dec) f32
    # h_ref: (B_pad, h_dec) bf16   -- f32 accumulation + f32 tanh, cast at store.
    acc = jnp.dot(x_ref[...], w1_ref[...], preferred_element_type=jnp.float32)
    h_ref[...] = jnp.tanh(acc + b1_ref[...]).astype(h_ref.dtype)


def _head_kernel(h_ref, w2_ref, b2_ref, out_ref):
    # h: (B_pad, h_dec) bf16 (resident), w2: (h_dec, tn) bf16, b2: (1, tn) f32
    # out: (B_pad, tn) f32 -- lane-dense (tn multiple of 128) unmasked store.
    out_ref[...] = (
        jnp.dot(h_ref[...], w2_ref[...], preferred_element_type=jnp.float32)
        + b2_ref[...]).astype(out_ref.dtype)


def _run_linear_decoder(encoded, root_indexes, w1, b1, w2, b2, seq_len):
    """encoded: [N, h_enc] f32, root_indexes: [B] i32 -> logits [S, B, V] f32."""
    _, h_enc = encoded.shape
    h_dec = w1.shape[1]
    vocab = w2.shape[1]
    batch = root_indexes.shape[0]

    # ---- wrapper-side gather + batch padding (cheap XLA ops) ----------------
    roots = jnp.take(encoded, root_indexes, axis=0).astype(jnp.bfloat16)
    b_pad = _round_up(max(batch, 1), 16)  # bf16 sublane pack multiple
    roots_p = jnp.zeros((b_pad, h_enc), jnp.bfloat16).at[:batch].set(roots)

    # ---- kernel 1: h = tanh(roots @ w1 + b1), computed exactly once ---------
    vmem1 = 2 * (b_pad * h_enc * 2 + h_enc * h_dec * 2 + h_dec * 4
                 + b_pad * h_dec * 2)
    vmem1 = int(min(48 * 1024 * 1024, max(4 * 1024 * 1024, 2 * vmem1)))
    h = pl.pallas_call(
        _layer1_kernel,
        out_shape=jax.ShapeDtypeStruct((b_pad, h_dec), jnp.bfloat16),
        grid_spec=pltpu.PrefetchScalarGridSpec(
            num_scalar_prefetch=0,
            grid=(1,),
            in_specs=[
                pl.BlockSpec((b_pad, h_enc), lambda i: (0, 0)),
                pl.BlockSpec((h_enc, h_dec), lambda i: (0, 0)),
                pl.BlockSpec((1, h_dec), lambda i: (0, 0)),
            ],
            out_specs=pl.BlockSpec((b_pad, h_dec), lambda i: (0, 0)),
        ),
        compiler_params=pltpu.CompilerParams(
            dimension_semantics=("arbitrary",),
            vmem_limit_bytes=vmem1),
        cost_estimate=pl.CostEstimate(
            flops=2 * b_pad * h_enc * h_dec,
            transcendentals=b_pad * h_dec,
            bytes_accessed=(b_pad * h_enc * 2 + h_enc * h_dec * 2 + h_dec * 4
                            + b_pad * h_dec * 2)),
    )(roots_p, w1, b1)

    # ---- vocab tiling: pad vocab to 128 first, derive tn from tile count ----
    v128 = _round_up(vocab, 128)
    # VMEM-budget-derived cap on tn (double-buffered w2 tile + b2 + out block).
    per_lane_bytes = 2 * (h_dec * 2 + 4 + b_pad * 4)
    budget = 40 * 1024 * 1024 - 2 * b_pad * h_dec * 2       # minus resident h
    tn_cap = max(128, min(4096, (budget // per_lane_bytes) // 128 * 128))
    num_vt = pl.cdiv(v128, tn_cap)
    if v128 > 128:
        num_vt = max(num_vt, 2)   # v7x: keep both TensorCores busy
    tn = _round_up(pl.cdiv(v128, num_vt), 128)
    v_pad = num_vt * tn

    w2_p = jnp.zeros((h_dec, v_pad), jnp.bfloat16).at[:, :vocab].set(w2)
    b2_p = jnp.zeros((1, v_pad), jnp.float32).at[:, :vocab].set(b2)

    grid_spec = pltpu.PrefetchScalarGridSpec(
        num_scalar_prefetch=0,
        grid=(num_vt,),
        in_specs=[
            pl.BlockSpec((b_pad, h_dec), lambda j: (0, 0)),   # resident h (tiny)
            pl.BlockSpec((h_dec, tn), lambda j: (0, j)),      # per vocab tile
            pl.BlockSpec((1, tn), lambda j: (0, j)),
        ],
        out_specs=pl.BlockSpec((b_pad, tn), lambda j: (0, j)),
    )

    cost = pl.CostEstimate(
        flops=2 * b_pad * h_dec * v_pad,
        transcendentals=0,
        bytes_accessed=(b_pad * h_dec * 2 + h_dec * v_pad * 2 + v_pad * 4
                        + b_pad * v_pad * 4))

    # Double-buffered per-tile working set + resident h, with 25% headroom,
    # clamped below v7x's 64 MiB physical VMEM.
    vmem2 = (2 * (h_dec * tn * 2 + tn * 4 + b_pad * tn * 4)
             + 2 * b_pad * h_dec * 2)
    vmem2 = int(min(48 * 1024 * 1024,
                    max(4 * 1024 * 1024, vmem2 + vmem2 // 4)))

    logits_bv = pl.pallas_call(
        _head_kernel,
        out_shape=jax.ShapeDtypeStruct((b_pad, v_pad), jnp.float32),
        grid_spec=grid_spec,
        compiler_params=pltpu.CompilerParams(
            dimension_semantics=("parallel",),
            vmem_limit_bytes=vmem2),
        cost_estimate=cost,
    )(h, w2_p, b2_p)

    # Strip batch / vocab padding, then broadcast the seq axis in the wrapper
    # (interface requires [S, B, V]; XLA can fuse / lazily materialize this).
    logits_bv = logits_bv[:batch, :vocab]
    return jnp.broadcast_to(logits_bv[None], (seq_len, batch, vocab))


# ------------------------- Module-like JAX wrappers --------------------------
class ITreeDecoderJ:
    name = "Interface for decoding tree vectors"

    def __init__(self, h_enc: int, h_dec: int, label_to_id: Dict) -> None:
        self.h_enc = h_enc
        self.h_dec = h_dec
        self.label_to_id = dict(label_to_id)
        if UNK not in self.label_to_id:
            self.label_to_id[UNK] = len(self.label_to_id)
        self.out_size = len(self.label_to_id)
        self.pad_index = self.label_to_id.get(PAD, -1)

    def __call__(self, encoded_data, labels, root_indexes):
        raise NotImplementedError


class LinearTreeDecoder(ITreeDecoderJ):
    name = "linear"

    def __init__(self, h_enc: int, h_dec: int, label_to_id: Dict) -> None:
        super().__init__(h_enc, h_dec, label_to_id)
        # Deterministic parameter init (synthetic weights, no checkpoint).
        # Weights stored bf16 (MXU-native); biases f32.
        k = jax.random.PRNGKey(0)
        k1, k2, k3, k4 = jax.random.split(k, 4)
        s1 = 1.0 / jnp.sqrt(h_enc)
        s2 = 1.0 / jnp.sqrt(h_dec)
        self.w1 = jax.random.uniform(k1, (h_enc, h_dec), jnp.float32,
                                     -s1, s1).astype(jnp.bfloat16)
        self.b1 = jax.random.uniform(k2, (1, h_dec), jnp.float32, -s1, s1)
        self.w2 = jax.random.uniform(k3, (h_dec, self.out_size), jnp.float32,
                                     -s2, s2).astype(jnp.bfloat16)
        self.b2 = jax.random.uniform(k4, (1, self.out_size), jnp.float32,
                                     -s2, s2)

    def __call__(self, encoded_data, labels, root_indexes):
        # encoded_data: [num_nodes, h_enc]
        # labels:       [seq_len, batch]   (only seq_len is needed here)
        # root_indexes: [batch]
        seq_len = labels.shape[0]
        return _run_linear_decoder(
            encoded_data, root_indexes.astype(jnp.int32),
            self.w1, self.b1, self.w2, self.b2, seq_len)


class DecoderJ:
    """JAX/Pallas counterpart of the PyTorch `Decoder` dispatcher."""
    _known_decoders = {}

    def __init__(self, h_enc: int, h_dec: int, label_to_id: Dict,
                 name: str, params: Dict):
        self.h_enc = h_enc
        self.h_dec = h_dec
        self.label_to_id = label_to_id
        self.decoder_name = name
        if self.decoder_name not in self._known_decoders:
            raise ValueError(f"Unknown decoder: {self.decoder_name}")
        self.decoder = self._known_decoders[self.decoder_name](
            self.h_enc, self.h_dec, self.label_to_id, **params)

    def __call__(self, encoded_data, labels, root_indexes):
        return self.decoder(encoded_data, labels, root_indexes)

    @staticmethod
    def register_decoder(tree_decoder):
        if not issubclass(tree_decoder, ITreeDecoderJ):
            raise ValueError("Attempt to register not a Tree Decoder class")
        DecoderJ._known_decoders[tree_decoder.name] = tree_decoder

    @staticmethod
    def get_known_decoders():
        return list(DecoderJ._known_decoders.keys())


DecoderJ.register_decoder(LinearTreeDecoder)


# ---------------------------------- main -------------------------------------
if __name__ == "__main__":
    # Small shapes consistent with the forward contract.
    num_nodes, h_enc, h_dec = 16, 32, 32
    batch, seq_len = 2, 8

    label_to_id = {PAD: 0}
    for i in range(10):
        label_to_id[f"tok_{i}"] = len(label_to_id)
    # UNK is appended inside ITreeDecoderJ -> vocab = 12

    key = jax.random.PRNGKey(0)
    k_enc, k_roots, k_lab = jax.random.split(key, 3)
    encoded_data = jax.random.normal(k_enc, (num_nodes, h_enc), jnp.float32)
    root_indexes = jax.random.randint(k_roots, (batch,), 0, num_nodes, jnp.int32)
    labels = jax.random.randint(k_lab, (seq_len, batch), 0,
                                len(label_to_id) + 1, jnp.int32)

    decoder = DecoderJ(h_enc, h_dec, label_to_id, name="linear", params={})
    logits = decoder(encoded_data, labels, root_indexes)
    logits = jax.block_until_ready(logits)

    # Pure-JAX reference check (mirrors the kernel's bf16/f32 math).
    d = decoder.decoder
    roots = encoded_data[root_indexes].astype(jnp.bfloat16)
    h_ref = jnp.tanh(jnp.dot(roots, d.w1, preferred_element_type=jnp.float32)
                     + d.b1).astype(jnp.bfloat16)
    ref_bv = jnp.dot(h_ref, d.w2, preferred_element_type=jnp.float32) + d.b2
    ref = jnp.broadcast_to(ref_bv[None], (seq_len, batch, d.out_size))

    assert logits.shape == (seq_len, batch, d.out_size), logits.shape
    assert jnp.allclose(logits, ref, atol=5e-3, rtol=5e-3)

    print("KERNEL_OK")
</pallas_src>

<mosaic_0001>
module attributes {stable_mosaic.version = 11 : i64} {
  func.func @_layer1_kernel(%arg0: i32, %arg1: memref<16x32xbf16, #tpu.memory_space<vmem>>, %arg2: memref<32x32xbf16, #tpu.memory_space<vmem>>, %arg3: memref<1x32xf32, #tpu.memory_space<vmem>>, %arg4: memref<16x32xbf16, #tpu.memory_space<vmem>>) attributes {dimension_semantics = [#tpu.dimension_semantics<arbitrary>], iteration_bounds = array<i64: 1>, scalar_prefetch = 0 : i64, scratch_operands = 0 : i64, tpu.core_type = #tpu.core_type<tc>, window_params = [{pipeline_mode = #tpu.pipeline_mode<synchronous>, transform_indices = @transform_0, window_bounds = array<i64: 16, 32>}, {pipeline_mode = #tpu.pipeline_mode<synchronous>, transform_indices = @transform_1, window_bounds = array<i64: 32, 32>}, {pipeline_mode = #tpu.pipeline_mode<synchronous>, transform_indices = @transform_2, window_bounds = array<i64: 1, 32>}, {pipeline_mode = #tpu.pipeline_mode<synchronous>, transform_indices = @transform_3, window_bounds = array<i64: 16, 32>}]} {
    %c0 = arith.constant 0 : index
    %c0_0 = arith.constant 0 : index
    %0 = vector.load %arg1[%c0, %c0_0] : memref<16x32xbf16, #tpu.memory_space<vmem>>, vector<16x32xbf16>
    %c0_1 = arith.constant 0 : index
    %c0_2 = arith.constant 0 : index
    %1 = vector.load %arg2[%c0_1, %c0_2] : memref<32x32xbf16, #tpu.memory_space<vmem>>, vector<32x32xbf16>
    %cst = arith.constant dense<0.000000e+00> : vector<16x32xf32>
    %2 = tpu.matmul %0, %1, %cst {dimension_numbers = #tpu.dot_dimension_numbers<[1], [0], [0], [1], [0, 0, 1, 1], [], []>} : vector<16x32xbf16>, vector<32x32xbf16>, vector<16x32xf32> -> vector<16x32xf32>
    %c0_3 = arith.constant 0 : index
    %c0_4 = arith.constant 0 : index
    %3 = vector.load %arg3[%c0_3, %c0_4] : memref<1x32xf32, #tpu.memory_space<vmem>>, vector<1x32xf32>
    %4 = vector.broadcast %3 : vector<1x32xf32> to vector<16x32xf32>
    %5 = arith.addf %2, %4 : vector<16x32xf32>
    %6 = math.tanh %5 : vector<16x32xf32>
    %7 = arith.truncf %6 : vector<16x32xf32> to vector<16x32xbf16>
    %c0_5 = arith.constant 0 : index
    %c0_6 = arith.constant 0 : index
    %8 = vector.load %arg4[%c0_5, %c0_6] : memref<16x32xbf16, #tpu.memory_space<vmem>>, vector<16x32xbf16>
    tpu.vector_store %arg4[%c0_5, %c0_6], %7 {strides = array<i32>} : memref<16x32xbf16, #tpu.memory_space<vmem>>, vector<16x32xbf16>,
    return
  }
  func.func @transform_0(%arg0: i32) -> (i32, i32) {
    %c0_i32 = arith.constant 0 : i32
    %c0_i32_0 = arith.constant 0 : i32
    %c0_i32_1 = arith.constant 0 : i32
    return %c0_i32, %c0_i32_0 : i32, i32
  }
  func.func @transform_1(%arg0: i32) -> (i32, i32) {
    %c0_i32 = arith.constant 0 : i32
    %c0_i32_0 = arith.constant 0 : i32
    %c0_i32_1 = arith.constant 0 : i32
    return %c0_i32, %c0_i32_0 : i32, i32
  }
  func.func @transform_2(%arg0: i32) -> (i32, i32) {
    %c0_i32 = arith.constant 0 : i32
    %c0_i32_0 = arith.constant 0 : i32
    %c0_i32_1 = arith.constant 0 : i32
    return %c0_i32, %c0_i32_0 : i32, i32
  }
  func.func @transform_3(%arg0: i32) -> (i32, i32) {
    %c0_i32 = arith.constant 0 : i32
    %c0_i32_0 = arith.constant 0 : i32
    %c0_i32_1 = arith.constant 0 : i32
    return %c0_i32, %c0_i32_0 : i32, i32
  }
}

</mosaic_0001>

<llo_original>
// kernel: tpu_custom_call.1
$region0: #{tpu_custom_call.1}
  #allocation0 [shape = 'u32[]', space=smem, size = 0x4, offset = 0x4, fixed_abs, tag = 'smem constant byte address 0x4 - core index']
  #allocation1 [shape = 'u32[72,128]{1,0:T(1,128)}', space=vmem, size = 0x9000, scoped, tag = 'internal scratch']
  %s0 = inlined_call_operand.hbm [shape: bf16[16,32], index: 0, kind: input, shape index: {}]
  %s1 = inlined_call_operand.hbm [shape: bf16[32,32], index: 1, kind: input, shape index: {}]
  %s2 = inlined_call_operand.vmem [shape: f32[1,32], index: 2, kind: input, shape index: {}]
  %s3 = inlined_call_operand.hbm [shape: bf16[16,32], index: 3, kind: output, shape index: {}]
  %s4 = sld [smem:[#allocation0]]
  $region30: #{tpu_custom_call.1} parent=0
    _
  %s6 = ssub.s32 1, %s4
  %s7 = scalar_select 0, %s6, %s4
  $region1: #{tpu_custom_call.1} parent=0
    #allocation2 [shape = 'u8[4096]{0}', space=vmem, size = 0x1000, scoped, tag = 'input window, operand 0, single buffered']
    #allocation3 [shape = 's32[1]{0}', space=sflag, size = 0x4, scoped, tag = 'scoped memory for tpu_custom_call.1']
    #allocation4 [shape = 's32[1]{0}', space=sflag, size = 0x4, scoped, tag = 'scoped memory for tpu_custom_call.1']
    #allocation5 [shape = 'u8[8192]{0}', space=vmem, size = 0x2000, scoped, tag = 'input window, operand 1, single buffered']
    #allocation6 [shape = 's32[1]{0}', space=sflag, size = 0x4, scoped, tag = 'scoped memory for tpu_custom_call.1']
    #allocation7 [shape = 'u8[4096]{0}', space=vmem, size = 0x1000, scoped, tag = 'output window, operand 0, single buffered']
    %8 = vsyncpa [#allocation3], 0
    %9 = vsyncpa [#allocation6], 0
    %10 = vsyncpa [#allocation4], 0
    // Predicated region
    $region2: #{tpu_custom_call.1} parent=1 // pred_check
      _
    $region3: #{tpu_custom_call.1} parent=1 // pred_check_branch
      %12 = sbr.rel (0) target = $region5
    $region4: #{tpu_custom_call.1} parent=1 // pred_region
      %14 = vsyncadd [#allocation3], 0
      %s15 = sshll.u32 %s0, 4
      %s16 = int_to_ptr.hbm [resolvable:$true] %s15
      %s17 = sshll.u32 [#allocation2], 4
      %s18 = int_to_ptr.vmem [resolvable:$true] %s17
      %23 = dma.hbm_to_vmem [thread:$0]  %s16, 128, %s18, [#allocation3], 64, 64, 4
    $region5: #{tpu_custom_call.1} parent=1 // pred_fallthru
      _
    // Predicated region
    $region6: #{tpu_custom_call.1} parent=1 // pred_check
      _
    $region7: #{tpu_custom_call.1} parent=1 // pred_check_branch
      %25 = sbr.rel (0) target = $region9
    $region8: #{tpu_custom_call.1} parent=1 // pred_region
      %27 = vsyncadd [#allocation6], 0
      %s28 = sshll.u32 %s1, 4
      %s29 = int_to_ptr.hbm [resolvable:$true] %s28
      %s30 = sshll.u32 [#allocation5], 4
      %s31 = int_to_ptr.vmem [resolvable:$true] %s30
      %36 = dma.hbm_to_vmem [thread:$0]  %s29, 256, %s31, [#allocation6], 64, 64, 4
    $region9: #{tpu_custom_call.1} parent=1 // pred_fallthru
      _
    // Predicated region
    $region10: #{tpu_custom_call.1} parent=1 // pred_check
      _
    $region11: #{tpu_custom_call.1} parent=1 // pred_check_branch
      %38 = sbr.rel (0) target = $region13
    $region12: #{tpu_custom_call.1} parent=1 // pred_region
      _
    $region13: #{tpu_custom_call.1} parent=1 // pred_fallthru
      _
    // Predicated region
    $region14: #{tpu_custom_call.1} parent=1 // pred_check
      _
    $region15: #{tpu_custom_call.1} parent=1 // pred_check_branch
      %40 = sbr.rel (0) target = $region17
    $region16: #{tpu_custom_call.1} parent=1 // pred_region
      %42 = dma.done [#allocation3], 128
    $region17: #{tpu_custom_call.1} parent=1 // pred_fallthru
      _
    // Predicated region
    $region18: #{tpu_custom_call.1} parent=1 // pred_check
      _
    $region19: #{tpu_custom_call.1} parent=1 // pred_check_branch
      %44 = sbr.rel (0) target = $region21
    $region20: #{tpu_custom_call.1} parent=1 // pred_region
      %46 = dma.done [#allocation6], 256
    $region21: #{tpu_custom_call.1} parent=1 // pred_fallthru
      _
    %v48 = vld [vmem:[#allocation2] sm:$0xf]
    %v49 = vld [vmem:[#allocation2 + $0x4] sm:$0xf]
    %v50 = vld [vmem:[#allocation5] sm:$0xf]
    %v51 = vld [vmem:[#allocation5 + $0x4] sm:$0xf]
    %v52 = vld [vmem:[#allocation5 + $0x8] sm:$0xf]
    %v53 = vld [vmem:[#allocation5 + $0xc] sm:$0xf]
    %v54 = vld [vmem:[%s2] sm:$0x1]
    %v56 = vperm.slane %v54, 0
    %v60 = vunpack.c.l.b16 %v48
    %v61 = vunpack.c.l.b16 %v49
    %v62 = vpack.c.b16 %v61, %v60
    %v67 = vunpack.c.l.b16 %v50
    %v68 = vunpack.c.l.b16 %v51
    %v69 = vunpack.c.l.b16 %v52
    %v70 = vunpack.c.l.b16 %v53
    %v71 = vpack.c.b16 %v68, %v67
    %v72 = vpack.c.b16 %v70, %v69
    %vm75 = vcmask 261120
    %v77 = vsel %vm75, %v62, 0
    %79 = vmatpush.bf16.msra.mxu0 0
    %80 = vmatpush.bf16.msra.mxu0 0
    %81 = vmatpush.bf16.msra.mxu0 0
    %82 = vmatpush.bf16.msra.mxu0 0
    %83 = vmatpush.bf16.msra.mxu0 0
    %84 = vmatpush.bf16.msra.mxu0 0
    %85 = vmatpush.bf16.msra.mxu0 %v72
    %86 = vmatpush.bf16.msra.mxu0 %v71
    %87 = vmatmul.bf16.gmra.mxu0 %v77
    %v88 = vpop.f32.mrf.mxu0
    %v89 = vadd.f32 %v56, %v88
    %v90 = vpop.f32.mrf.mxu0
    %v91 = vadd.f32 %v56, %v90
    %92 = vdwg.mxu0
    %v93 = vtanh.pop %v89
    %v94 = vtanh.pop %v91
    %v95 = vpack.c.bf16 %v93, %v93
    %v96 = vpack.c.bf16 %v94, %v94
    %vm97 = vcmask 257024
    %98 = vst.msk [vmem:[#allocation7] sm:$0xf] %vm97, %v95
    %99 = vst.msk [vmem:[#allocation7 + $0x4] sm:$0xf] %vm97, %v96
    // Predicated region
    $region22: #{tpu_custom_call.1} parent=1 // pred_check
      _
    $region23: #{tpu_custom_call.1} parent=1 // pred_check_branch
      %101 = sbr.rel (0) target = $region25
    $region24: #{tpu_custom_call.1} parent=1 // pred_region
      %103 = vsyncadd [#allocation4], 0
      %s104 = sshll.u32 [#allocation7], 4
      %s105 = int_to_ptr.vmem [resolvable:$true] %s104
      %s106 = sshll.u32 %s3, 4
      %s107 = int_to_ptr.hbm [resolvable:$true] %s106
      %112 = dma.vmem_to_hbm [thread:$0]  %s105, 128, %s107, [#allocation4], 64, 64, 4
    $region25: #{tpu_custom_call.1} parent=1 // pred_fallthru
      _
    // Predicated region
    $region26: #{tpu_custom_call.1} parent=1 // pred_check
      _
    $region27: #{tpu_custom_call.1} parent=1 // pred_check_branch
      %114 = sbr.rel (0) target = $region29
    $region28: #{tpu_custom_call.1} parent=1 // pred_region
      %116 = dma.done [#allocation4], 128
    $region29: #{tpu_custom_call.1} parent=1 // pred_fallthru
      _
    %117 = vsyncpa [#allocation3], 1
    %118 = vsyncpa [#allocation6], 1
    %119 = vsyncpa [#allocation4], 1

</llo_original>
